<compile_context>
chip_gen: v6e
topology: v6e:2x2x1
jax: 0.10.0
libtpu: 0.0.40
codegen_flags: <defaults>
</compile_context>

<pallas_src>
import functools

import jax
import jax.numpy as jnp
from jax.experimental import pallas as pl
from jax.experimental.pallas import tpu as pltpu


def _round_up(x, m):
    return ((x + m - 1) // m) * m


def _conv2d_kernel(w_ref, b_ref, x_ref, o_ref, xp_ref, *,
                   C_in, C_out, K, H, W, TN, TB, pad, base, Lf):
    """One grid step: same-padded conv over a block of TN batch images.

    w_ref : SMEM (C_out*C_in*K*K,)  flattened OIHW weights (scalar prefetch)
    b_ref : SMEM (C_out,)           bias                   (scalar prefetch)
    x_ref : VMEM (TN, C_in, H*W)    input block, HW flattened (lane-dense)
    o_ref : VMEM (TN, C_out, H*W)   output block, HW flattened (lane-dense)
    xp_ref: VMEM (C_in, TN, Lf)     row-padded, flattened f32 scratch
                                    (interior x[n, ci, h, w] lives at flat
                                     index base + h*W + w of row (ci, n))
    """
    HW = H * W

    # Halo-only zeroing: just the pre/post row-padding strips (both start/end
    # at multiples of 128 lanes).  Re-zeroed every step (idempotent) because
    # "parallel" grid steps may land on different TensorCores.
    xp_ref[:, :, 0:base] = jnp.zeros((C_in, TN, base), jnp.float32)
    xp_ref[:, :, base + HW:Lf] = jnp.zeros((C_in, TN, Lf - base - HW),
                                           jnp.float32)
    # Interior: one contiguous, lane-aligned 256-lane slice store per channel.
    for ci in range(C_in):
        xp_ref[ci, :, base:base + HW] = x_ref[:, ci, :].astype(jnp.float32)

    # Per-kw column masks zeroing the row-wrap lanes of each shifted window.
    # Computed once per kernel invocation (constants); (1, HW) broadcasts
    # over the TB batch rows.  Center column (kw == pad) needs no mask.
    col = jax.lax.broadcasted_iota(jnp.int32, (1, HW), 1) % W
    masks = []
    for kw in range(K):
        lo = max(0, pad - kw)
        hi = W - max(0, kw - pad)
        masks.append(None if (lo == 0 and hi == W)
                     else ((col >= lo) & (col < hi)).astype(jnp.float32))

    # Fully-unrolled shifted-window MACs on the VPU, f32 accumulation.
    # Loop order (ci, kh, kw) outermost so each window load + mask is shared
    # by all C_out accumulators; every op works on dense (TB, HW) tiles.
    # NOTE: an im2col + jnp.dot MXU path only pays off once C_in*K*K and
    # C_out both approach the MXU dimensions (>=128); not the case here.
    for t in range(TN // TB):
        n0 = t * TB
        acc = [jnp.full((TB, HW), b_ref[co], dtype=jnp.float32)
               for co in range(C_out)]
        for ci in range(C_in):
            for kh in range(K):
                for kw in range(K):
                    s = base + (kh - pad) * W + (kw - pad)
                    win = xp_ref[ci, n0:n0 + TB, s:s + HW]
                    if masks[kw] is not None:
                        win = win * masks[kw]
                    for co in range(C_out):
                        w = w_ref[((co * C_in + ci) * K + kh) * K + kw]
                        acc[co] = acc[co] + w * win
        for co in range(C_out):
            # Lane-dense store: last dim is HW (multiple of 128 for 16x16).
            o_ref[n0:n0 + TB, co, :] = acc[co].astype(o_ref.dtype)


def _pick_batch_block(N, per_image_bytes, max_block_bytes=8 << 20):
    """Largest divisor of N whose VMEM block footprint fits the budget.

    The grid is a serial loop on single-TensorCore chips (v5e/v6e), so a
    single big step is preferred; extra steps only add ~0.35us each.
    (On v7x an even step count would keep both cores busy, but at these sizes
    the whole batch fits in one step anyway.)
    """
    best = 1
    for tn in range(1, N + 1):
        if N % tn:
            continue
        if tn * per_image_bytes > max_block_bytes:
            break
        best = tn
    return best


def prior2d_to_2d(x, weight, bias):
    """Equivalent of Prior2DTo2D.forward: same-padded Conv2d + bias."""
    N, C_in, H, W = x.shape
    C_out, C_in_w, K, K2 = weight.shape
    assert C_in == C_in_w and K == K2 and K % 2 == 1
    pad = K // 2
    HW = H * W
    itemsize = jnp.dtype(x.dtype).itemsize

    # Row-only padded, HW-flattened scratch layout:
    #   x[n, ci, h, w] lives at flat index base + h*W + w of row (ci, n);
    #   tap (kh, kw) is the contiguous HW slice starting at
    #   base + (kh-pad)*W + (kw-pad); column wrap is masked in-kernel.
    # base is rounded to 128 lanes (>= pad*(W+1) so all tap slices stay
    # in-bounds); Lf leaves room for the largest positive shift.
    base = _round_up(pad * (W + 1), 128)
    Lf = _round_up(base + HW + pad * (W + 1), 128)

    # Per-image VMEM footprint: input block + output block + padded scratch.
    per_image_bytes = (C_in * HW * itemsize
                       + C_out * HW * itemsize
                       + C_in * Lf * 4)
    TN = _pick_batch_block(N, per_image_bytes)
    # TODO(synk): fall back to spatial (H) tiling if one image exceeds budget.
    # Inner sub-chunk (bounds live accumulator vregs): largest divisor <= 8.
    TB = max(d for d in range(1, min(TN, 8) + 1) if TN % d == 0)

    x_flat = x.reshape(N, C_in, HW)                 # free contiguous reshape
    w_flat = weight.reshape(-1).astype(jnp.float32)
    b = bias.astype(jnp.float32)

    kernel = functools.partial(
        _conv2d_kernel,
        C_in=C_in, C_out=C_out, K=K, H=H, W=W,
        TN=TN, TB=TB, pad=pad, base=base, Lf=Lf)

    # Double-buffered in/out blocks + scratch with headroom, capped below the
    # v7x 64 MiB physical VMEM.
    block_bytes = TN * per_image_bytes
    vmem_limit = int(min(48 << 20, max(16 << 20, 8 * block_bytes)))

    cost = pl.CostEstimate(
        flops=2 * N * C_out * C_in * K * K * HW,
        transcendentals=0,
        bytes_accessed=(x.size * itemsize            # input read once
                        + N * C_out * HW * itemsize  # output written once
                        + w_flat.size * 4 + b.size * 4))

    out_flat = pl.pallas_call(
        kernel,
        out_shape=jax.ShapeDtypeStruct((N, C_out, HW), x.dtype),
        grid_spec=pltpu.PrefetchScalarGridSpec(
            num_scalar_prefetch=2,          # weights + bias land in SMEM
            grid=(N // TN,),
            in_specs=[
                pl.BlockSpec((TN, C_in, HW),
                             lambda n, w_s, b_s: (n, 0, 0)),
            ],
            out_specs=pl.BlockSpec((TN, C_out, HW),
                                   lambda n, w_s, b_s: (n, 0, 0)),
            scratch_shapes=[pltpu.VMEM((C_in, TN, Lf), jnp.float32)],
        ),
        compiler_params=pltpu.CompilerParams(
            dimension_semantics=("parallel",),
            vmem_limit_bytes=vmem_limit),
        cost_estimate=cost,
    )(w_flat, b, x_flat)

    # Free contiguous split back to NCHW.
    return out_flat.reshape(N, C_out, H, W)


if __name__ == "__main__":
    def run_case(name, N, C_in, C_out, K, H, W, key):
        kw_key, kx_key = jax.random.split(key)
        # Deterministic synthetic weights; bias filled with 2 per the module's
        # __init__ (self._conv.bias.data.fill_(2)).
        weight = 0.1 * jax.random.normal(
            kw_key, (C_out, C_in, K, K), dtype=jnp.float32)
        bias = jnp.full((C_out,), 2.0, dtype=jnp.float32)
        x = jax.random.normal(kx_key, (N, C_in, H, W), dtype=jnp.float32)

        out = jax.block_until_ready(prior2d_to_2d(x, weight, bias))

        ref = jax.lax.conv_general_dilated(
            x, weight, window_strides=(1, 1),
            padding=((K // 2, K // 2), (K // 2, K // 2)),
            dimension_numbers=("NCHW", "OIHW", "NCHW"),
        ) + bias.reshape(1, -1, 1, 1)

        assert out.shape == (N, C_out, H, W), name
        assert jnp.allclose(out, ref, atol=1e-5, rtol=1e-5), name

    key = jax.random.PRNGKey(0)
    k1, k2 = jax.random.split(key)
    # Module defaults: in_channels=1, out_channels=1, final_kernel_size=5.
    run_case("default", N=2, C_in=1, C_out=1, K=5, H=16, W=16, key=k1)
    # Multichannel config to exercise the general path.
    run_case("multichannel", N=4, C_in=2, C_out=3, K=3, H=16, W=16, key=k2)
    print("KERNEL_OK")
</pallas_src>

<mosaic_0001>
module attributes {stable_mosaic.version = 11 : i64} {
  func.func @_conv2d_kernel(%arg0: i32, %arg1: memref<25xf32, #tpu.memory_space<smem>>, %arg2: memref<1xf32, #tpu.memory_space<smem>>, %arg3: memref<2x1x256xf32, #tpu.memory_space<vmem>>, %arg4: memref<2x1x256xf32, #tpu.memory_space<vmem>>, %arg5: memref<1x2x512xf32, #tpu.memory_space<vmem>>) attributes {dimension_semantics = [#tpu.dimension_semantics<parallel>], iteration_bounds = array<i64: 1>, scalar_prefetch = 2 : i64, scratch_operands = 1 : i64, tpu.core_type = #tpu.core_type<tc>, window_params = [{transform_indices = @transform_0, window_bounds = array<i64: 2, 1, 256>}, {transform_indices = @transform_1, window_bounds = array<i64: 2, 1, 256>}]} {
    %cst = arith.constant 0.000000e+00 : f32
    %0 = vector.broadcast %cst : f32 to vector<1x2x128xf32>
    %c0 = arith.constant 0 : index
    %c0_0 = arith.constant 0 : index
    %c0_1 = arith.constant 0 : index
    %1 = vector.load %arg5[%c0, %c0_0, %c0_1] : memref<1x2x512xf32, #tpu.memory_space<vmem>>, vector<1x2x128xf32>
    tpu.vector_store %arg5[%c0, %c0_0, %c0_1], %0 {strides = array<i32>} : memref<1x2x512xf32, #tpu.memory_space<vmem>>, vector<1x2x128xf32>,
    %cst_2 = arith.constant 0.000000e+00 : f32
    %2 = vector.broadcast %cst_2 : f32 to vector<1x2x128xf32>
    %c0_3 = arith.constant 0 : index
    %c0_4 = arith.constant 0 : index
    %c384 = arith.constant 384 : index
    %3 = vector.load %arg5[%c0_3, %c0_4, %c384] : memref<1x2x512xf32, #tpu.memory_space<vmem>>, vector<1x2x128xf32>
    tpu.vector_store %arg5[%c0_3, %c0_4, %c384], %2 {strides = array<i32>} : memref<1x2x512xf32, #tpu.memory_space<vmem>>, vector<1x2x128xf32>,
    %c0_5 = arith.constant 0 : index
    %c0_6 = arith.constant 0 : index
    %c0_7 = arith.constant 0 : index
    %4 = vector.load %arg3[%c0_5, %c0_6, %c0_7] : memref<2x1x256xf32, #tpu.memory_space<vmem>>, vector<2x1x256xf32>
    %5 = vector.shape_cast %4 : vector<2x1x256xf32> to vector<2x256xf32>
    %c0_8 = arith.constant 0 : index
    %c0_9 = arith.constant 0 : index
    %c128 = arith.constant 128 : index
    %6 = vector.load %arg5[%c0_8, %c0_9, %c128] : memref<1x2x512xf32, #tpu.memory_space<vmem>>, vector<1x2x256xf32>
    %7 = vector.shape_cast %6 : vector<1x2x256xf32> to vector<2x256xf32>
    %8 = vector.shape_cast %5 : vector<2x256xf32> to vector<1x2x256xf32>
    tpu.vector_store %arg5[%c0_8, %c0_9, %c128], %8 {strides = array<i32>} : memref<1x2x512xf32, #tpu.memory_space<vmem>>, vector<1x2x256xf32>,
    %9 = tpu.iota {dimensions = array<i32: 1>} : vector<1x256xi32>
    %c16_i32 = arith.constant 16 : i32
    %c0_i32 = arith.constant 0 : i32
    %10 = arith.cmpi eq, %c16_i32, %c0_i32 : i32
    %c1_i32 = arith.constant 1 : i32
    %11 = arith.select %10, %c1_i32, %c16_i32 : i32
    %12 = vector.broadcast %11 : i32 to vector<1x256xi32>
    %13 = arith.remsi %9, %12 : vector<1x256xi32>
    %c0_i32_10 = arith.constant 0 : i32
    %14 = vector.broadcast %c0_i32_10 : i32 to vector<1x256xi32>
    %15 = arith.cmpi ne, %13, %14 : vector<1x256xi32>
    %c0_i32_11 = arith.constant 0 : i32
    %16 = vector.broadcast %c0_i32_11 : i32 to vector<1x256xi32>
    %17 = arith.cmpi slt, %13, %16 : vector<1x256xi32>
    %c0_i32_12 = arith.constant 0 : i32
    %18 = arith.cmpi slt, %11, %c0_i32_12 : i32
    %19 = vector.broadcast %18 : i1 to vector<1x256xi1>
    %20 = vector.broadcast %19 : vector<1x256xi1> to vector<1x256xi1>
    %21 = arith.xori %17, %20 : vector<1x256xi1>
    %22 = arith.andi %21, %15 : vector<1x256xi1>
    %23 = vector.broadcast %11 : i32 to vector<1x256xi32>
    %24 = arith.addi %13, %23 : vector<1x256xi32>
    %25 = arith.select %22, %24, %13 : vector<1x256xi1>, vector<1x256xi32>
    %c2_i32 = arith.constant 2 : i32
    %26 = vector.broadcast %c2_i32 : i32 to vector<1x256xi32>
    %27 = arith.cmpi sge, %25, %26 : vector<1x256xi32>
    %c16_i32_13 = arith.constant 16 : i32
    %28 = vector.broadcast %c16_i32_13 : i32 to vector<1x256xi32>
    %29 = arith.cmpi slt, %25, %28 : vector<1x256xi32>
    %30 = arith.andi %27, %29 : vector<1x256xi1>
    %31 = arith.extui %30 : vector<1x256xi1> to vector<1x256xi32>
    %32 = arith.sitofp %31 : vector<1x256xi32> to vector<1x256xf32>
    %c1_i32_14 = arith.constant 1 : i32
    %33 = vector.broadcast %c1_i32_14 : i32 to vector<1x256xi32>
    %34 = arith.cmpi sge, %25, %33 : vector<1x256xi32>
    %c16_i32_15 = arith.constant 16 : i32
    %35 = vector.broadcast %c16_i32_15 : i32 to vector<1x256xi32>
    %36 = arith.cmpi slt, %25, %35 : vector<1x256xi32>
    %37 = arith.andi %34, %36 : vector<1x256xi1>
    %38 = arith.extui %37 : vector<1x256xi1> to vector<1x256xi32>
    %39 = arith.sitofp %38 : vector<1x256xi32> to vector<1x256xf32>
    %c0_i32_16 = arith.constant 0 : i32
    %40 = vector.broadcast %c0_i32_16 : i32 to vector<1x256xi32>
    %41 = arith.cmpi sge, %25, %40 : vector<1x256xi32>
    %c15_i32 = arith.constant 15 : i32
    %42 = vector.broadcast %c15_i32 : i32 to vector<1x256xi32>
    %43 = arith.cmpi slt, %25, %42 : vector<1x256xi32>
    %44 = arith.andi %41, %43 : vector<1x256xi1>
    %45 = arith.extui %44 : vector<1x256xi1> to vector<1x256xi32>
    %46 = arith.sitofp %45 : vector<1x256xi32> to vector<1x256xf32>
    %c0_i32_17 = arith.constant 0 : i32
    %47 = vector.broadcast %c0_i32_17 : i32 to vector<1x256xi32>
    %48 = arith.cmpi sge, %25, %47 : vector<1x256xi32>
    %c14_i32 = arith.constant 14 : i32
    %49 = vector.broadcast %c14_i32 : i32 to vector<1x256xi32>
    %50 = arith.cmpi slt, %25, %49 : vector<1x256xi32>
    %51 = arith.andi %48, %50 : vector<1x256xi1>
    %52 = arith.extui %51 : vector<1x256xi1> to vector<1x256xi32>
    %53 = arith.sitofp %52 : vector<1x256xi32> to vector<1x256xf32>
    %c0_18 = arith.constant 0 : index
    %54 = memref.load %arg2[%c0_18] : memref<1xf32, #tpu.memory_space<smem>>
    %55 = vector.broadcast %54 : f32 to vector<2x256xf32>
    %c0_19 = arith.constant 0 : index
    %c0_20 = arith.constant 0 : index
    %c94 = arith.constant 94 : index
    %56 = vector.load %arg5[%c0_19, %c0_20, %c94] : memref<1x2x512xf32, #tpu.memory_space<vmem>>, vector<1x2x256xf32>
    %57 = vector.shape_cast %56 : vector<1x2x256xf32> to vector<2x256xf32>
    %58 = vector.broadcast %32 : vector<1x256xf32> to vector<2x256xf32>
    %59 = arith.mulf %57, %58 : vector<2x256xf32>
    %c0_21 = arith.constant 0 : index
    %60 = memref.load %arg1[%c0_21] : memref<25xf32, #tpu.memory_space<smem>>
    %61 = vector.broadcast %60 : f32 to vector<2x256xf32>
    %62 = arith.mulf %61, %59 : vector<2x256xf32>
    %63 = arith.addf %55, %62 : vector<2x256xf32>
    %c0_22 = arith.constant 0 : index
    %c0_23 = arith.constant 0 : index
    %c95 = arith.constant 95 : index
    %64 = vector.load %arg5[%c0_22, %c0_23, %c95] : memref<1x2x512xf32, #tpu.memory_space<vmem>>, vector<1x2x256xf32>
    %65 = vector.shape_cast %64 : vector<1x2x256xf32> to vector<2x256xf32>
    %66 = vector.broadcast %39 : vector<1x256xf32> to vector<2x256xf32>
    %67 = arith.mulf %65, %66 : vector<2x256xf32>
    %c1 = arith.constant 1 : index
    %68 = memref.load %arg1[%c1] : memref<25xf32, #tpu.memory_space<smem>>
    %69 = vector.broadcast %68 : f32 to vector<2x256xf32>
    %70 = arith.mulf %69, %67 : vector<2x256xf32>
    %71 = arith.addf %63, %70 : vector<2x256xf32>
    %c0_24 = arith.constant 0 : index
    %c0_25 = arith.constant 0 : index
    %c96 = arith.constant 96 : index
    %72 = vector.load %arg5[%c0_24, %c0_25, %c96] : memref<1x2x512xf32, #tpu.memory_space<vmem>>, vector<1x2x256xf32>
    %73 = vector.shape_cast %72 : vector<1x2x256xf32> to vector<2x256xf32>
    %c2 = arith.constant 2 : index
    %74 = memref.load %arg1[%c2] : memref<25xf32, #tpu.memory_space<smem>>
    %75 = vector.broadcast %74 : f32 to vector<2x256xf32>
    %76 = arith.mulf %75, %73 : vector<2x256xf32>
    %77 = arith.addf %71, %76 : vector<2x256xf32>
    %c0_26 = arith.constant 0 : index
    %c0_27 = arith.constant 0 : index
    %c97 = arith.constant 97 : index
    %78 = vector.load %arg5[%c0_26, %c0_27, %c97] : memref<1x2x512xf32, #tpu.memory_space<vmem>>, vector<1x2x256xf32>
    %79 = vector.shape_cast %78 : vector<1x2x256xf32> to vector<2x256xf32>
    %80 = vector.broadcast %46 : vector<1x256xf32> to vector<2x256xf32>
    %81 = arith.mulf %79, %80 : vector<2x256xf32>
    %c3 = arith.constant 3 : index
    %82 = memref.load %arg1[%c3] : memref<25xf32, #tpu.memory_space<smem>>
    %83 = vector.broadcast %82 : f32 to vector<2x256xf32>
    %84 = arith.mulf %83, %81 : vector<2x256xf32>
    %85 = arith.addf %77, %84 : vector<2x256xf32>
    %c0_28 = arith.constant 0 : index
    %c0_29 = arith.constant 0 : index
    %c98 = arith.constant 98 : index
    %86 = vector.load %arg5[%c0_28, %c0_29, %c98] : memref<1x2x512xf32, #tpu.memory_space<vmem>>, vector<1x2x256xf32>
    %87 = vector.shape_cast %86 : vector<1x2x256xf32> to vector<2x256xf32>
    %88 = vector.broadcast %53 : vector<1x256xf32> to vector<2x256xf32>
    %89 = arith.mulf %87, %88 : vector<2x256xf32>
    %c4 = arith.constant 4 : index
    %90 = memref.load %arg1[%c4] : memref<25xf32, #tpu.memory_space<smem>>
    %91 = vector.broadcast %90 : f32 to vector<2x256xf32>
    %92 = arith.mulf %91, %89 : vector<2x256xf32>
    %93 = arith.addf %85, %92 : vector<2x256xf32>
    %c0_30 = arith.constant 0 : index
    %c0_31 = arith.constant 0 : index
    %c110 = arith.constant 110 : index
    %94 = vector.load %arg5[%c0_30, %c0_31, %c110] : memref<1x2x512xf32, #tpu.memory_space<vmem>>, vector<1x2x256xf32>
    %95 = vector.shape_cast %94 : vector<1x2x256xf32> to vector<2x256xf32>
    %96 = vector.broadcast %32 : vector<1x256xf32> to vector<2x256xf32>
    %97 = arith.mulf %95, %96 : vector<2x256xf32>
    %c5 = arith.constant 5 : index
    %98 = memref.load %arg1[%c5] : memref<25xf32, #tpu.memory_space<smem>>
    %99 = vector.broadcast %98 : f32 to vector<2x256xf32>
    %100 = arith.mulf %99, %97 : vector<2x256xf32>
    %101 = arith.addf %93, %100 : vector<2x256xf32>
    %c0_32 = arith.constant 0 : index
    %c0_33 = arith.constant 0 : index
    %c111 = arith.constant 111 : index
    %102 = vector.load %arg5[%c0_32, %c0_33, %c111] : memref<1x2x512xf32, #tpu.memory_space<vmem>>, vector<1x2x256xf32>
    %103 = vector.shape_cast %102 : vector<1x2x256xf32> to vector<2x256xf32>
    %104 = vector.broadcast %39 : vector<1x256xf32> to vector<2x256xf32>
    %105 = arith.mulf %103, %104 : vector<2x256xf32>
    %c6 = arith.constant 6 : index
    %106 = memref.load %arg1[%c6] : memref<25xf32, #tpu.memory_space<smem>>
    %107 = vector.broadcast %106 : f32 to vector<2x256xf32>
    %108 = arith.mulf %107, %105 : vector<2x256xf32>
    %109 = arith.addf %101, %108 : vector<2x256xf32>
    %c0_34 = arith.constant 0 : index
    %c0_35 = arith.constant 0 : index
    %c112 = arith.constant 112 : index
    %110 = vector.load %arg5[%c0_34, %c0_35, %c112] : memref<1x2x512xf32, #tpu.memory_space<vmem>>, vector<1x2x256xf32>
    %111 = vector.shape_cast %110 : vector<1x2x256xf32> to vector<2x256xf32>
    %c7 = arith.constant 7 : index
    %112 = memref.load %arg1[%c7] : memref<25xf32, #tpu.memory_space<smem>>
    %113 = vector.broadcast %112 : f32 to vector<2x256xf32>
    %114 = arith.mulf %113, %111 : vector<2x256xf32>
    %115 = arith.addf %109, %114 : vector<2x256xf32>
    %c0_36 = arith.constant 0 : index
    %c0_37 = arith.constant 0 : index
    %c113 = arith.constant 113 : index
    %116 = vector.load %arg5[%c0_36, %c0_37, %c113] : memref<1x2x512xf32, #tpu.memory_space<vmem>>, vector<1x2x256xf32>
    %117 = vector.shape_cast %116 : vector<1x2x256xf32> to vector<2x256xf32>
    %118 = vector.broadcast %46 : vector<1x256xf32> to vector<2x256xf32>
    %119 = arith.mulf %117, %118 : vector<2x256xf32>
    %c8 = arith.constant 8 : index
    %120 = memref.load %arg1[%c8] : memref<25xf32, #tpu.memory_space<smem>>
    %121 = vector.broadcast %120 : f32 to vector<2x256xf32>
    %122 = arith.mulf %121, %119 : vector<2x256xf32>
    %123 = arith.addf %115, %122 : vector<2x256xf32>
    %c0_38 = arith.constant 0 : index
    %c0_39 = arith.constant 0 : index
    %c114 = arith.constant 114 : index
    %124 = vector.load %arg5[%c0_38, %c0_39, %c114] : memref<1x2x512xf32, #tpu.memory_space<vmem>>, vector<1x2x256xf32>
    %125 = vector.shape_cast %124 : vector<1x2x256xf32> to vector<2x256xf32>
    %126 = vector.broadcast %53 : vector<1x256xf32> to vector<2x256xf32>
    %127 = arith.mulf %125, %126 : vector<2x256xf32>
    %c9 = arith.constant 9 : index
    %128 = memref.load %arg1[%c9] : memref<25xf32, #tpu.memory_space<smem>>
    %129 = vector.broadcast %128 : f32 to vector<2x256xf32>
    %130 = arith.mulf %129, %127 : vector<2x256xf32>
    %131 = arith.addf %123, %130 : vector<2x256xf32>
    %c0_40 = arith.constant 0 : index
    %c0_41 = arith.constant 0 : index
    %c126 = arith.constant 126 : index
    %132 = vector.load %arg5[%c0_40, %c0_41, %c126] : memref<1x2x512xf32, #tpu.memory_space<vmem>>, vector<1x2x256xf32>
    %133 = vector.shape_cast %132 : vector<1x2x256xf32> to vector<2x256xf32>
    %134 = vector.broadcast %32 : vector<1x256xf32> to vector<2x256xf32>
    %135 = arith.mulf %133, %134 : vector<2x256xf32>
    %c10 = arith.constant 10 : index
    %136 = memref.load %arg1[%c10] : memref<25xf32, #tpu.memory_space<smem>>
    %137 = vector.broadcast %136 : f32 to vector<2x256xf32>
    %138 = arith.mulf %137, %135 : vector<2x256xf32>
    %139 = arith.addf %131, %138 : vector<2x256xf32>
    %c0_42 = arith.constant 0 : index
    %c0_43 = arith.constant 0 : index
    %c127 = arith.constant 127 : index
    %140 = vector.load %arg5[%c0_42, %c0_43, %c127] : memref<1x2x512xf32, #tpu.memory_space<vmem>>, vector<1x2x256xf32>
    %141 = vector.shape_cast %140 : vector<1x2x256xf32> to vector<2x256xf32>
    %142 = vector.broadcast %39 : vector<1x256xf32> to vector<2x256xf32>
    %143 = arith.mulf %141, %142 : vector<2x256xf32>
    %c11 = arith.constant 11 : index
    %144 = memref.load %arg1[%c11] : memref<25xf32, #tpu.memory_space<smem>>
    %145 = vector.broadcast %144 : f32 to vector<2x256xf32>
    %146 = arith.mulf %145, %143 : vector<2x256xf32>
    %147 = arith.addf %139, %146 : vector<2x256xf32>
    %c0_44 = arith.constant 0 : index
    %c0_45 = arith.constant 0 : index
    %c128_46 = arith.constant 128 : index
    %148 = vector.load %arg5[%c0_44, %c0_45, %c128_46] : memref<1x2x512xf32, #tpu.memory_space<vmem>>, vector<1x2x256xf32>
    %149 = vector.shape_cast %148 : vector<1x2x256xf32> to vector<2x256xf32>
    %c12 = arith.constant 12 : index
    %150 = memref.load %arg1[%c12] : memref<25xf32, #tpu.memory_space<smem>>
    %151 = vector.broadcast %150 : f32 to vector<2x256xf32>
    %152 = arith.mulf %151, %149 : vector<2x256xf32>
    %153 = arith.addf %147, %152 : vector<2x256xf32>
    %c0_47 = arith.constant 0 : index
    %c0_48 = arith.constant 0 : index
    %c129 = arith.constant 129 : index
    %154 = vector.load %arg5[%c0_47, %c0_48, %c129] : memref<1x2x512xf32, #tpu.memory_space<vmem>>, vector<1x2x256xf32>
    %155 = vector.shape_cast %154 : vector<1x2x256xf32> to vector<2x256xf32>
    %156 = vector.broadcast %46 : vector<1x256xf32> to vector<2x256xf32>
    %157 = arith.mulf %155, %156 : vector<2x256xf32>
    %c13 = arith.constant 13 : index
    %158 = memref.load %arg1[%c13] : memref<25xf32, #tpu.memory_space<smem>>
    %159 = vector.broadcast %158 : f32 to vector<2x256xf32>
    %160 = arith.mulf %159, %157 : vector<2x256xf32>
    %161 = arith.addf %153, %160 : vector<2x256xf32>
    %c0_49 = arith.constant 0 : index
    %c0_50 = arith.constant 0 : index
    %c130 = arith.constant 130 : index
    %162 = vector.load %arg5[%c0_49, %c0_50, %c130] : memref<1x2x512xf32, #tpu.memory_space<vmem>>, vector<1x2x256xf32>
    %163 = vector.shape_cast %162 : vector<1x2x256xf32> to vector<2x256xf32>
    %164 = vector.broadcast %53 : vector<1x256xf32> to vector<2x256xf32>
    %165 = arith.mulf %163, %164 : vector<2x256xf32>
    %c14 = arith.constant 14 : index
    %166 = memref.load %arg1[%c14] : memref<25xf32, #tpu.memory_space<smem>>
    %167 = vector.broadcast %166 : f32 to vector<2x256xf32>
    %168 = arith.mulf %167, %165 : vector<2x256xf32>
    %169 = arith.addf %161, %168 : vector<2x256xf32>
    %c0_51 = arith.constant 0 : index
    %c0_52 = arith.constant 0 : index
    %c142 = arith.constant 142 : index
    %170 = vector.load %arg5[%c0_51, %c0_52, %c142] : memref<1x2x512xf32, #tpu.memory_space<vmem>>, vector<1x2x256xf32>
    %171 = vector.shape_cast %170 : vector<1x2x256xf32> to vector<2x256xf32>
    %172 = vector.broadcast %32 : vector<1x256xf32> to vector<2x256xf32>
    %173 = arith.mulf %171, %172 : vector<2x256xf32>
    %c15 = arith.constant 15 : index
    %174 = memref.load %arg1[%c15] : memref<25xf32, #tpu.memory_space<smem>>
    %175 = vector.broadcast %174 : f32 to vector<2x256xf32>
    %176 = arith.mulf %175, %173 : vector<2x256xf32>
    %177 = arith.addf %169, %176 : vector<2x256xf32>
    %c0_53 = arith.constant 0 : index
    %c0_54 = arith.constant 0 : index
    %c143 = arith.constant 143 : index
    %178 = vector.load %arg5[%c0_53, %c0_54, %c143] : memref<1x2x512xf32, #tpu.memory_space<vmem>>, vector<1x2x256xf32>
    %179 = vector.shape_cast %178 : vector<1x2x256xf32> to vector<2x256xf32>
    %180 = vector.broadcast %39 : vector<1x256xf32> to vector<2x256xf32>
    %181 = arith.mulf %179, %180 : vector<2x256xf32>
    %c16 = arith.constant 16 : index
    %182 = memref.load %arg1[%c16] : memref<25xf32, #tpu.memory_space<smem>>
    %183 = vector.broadcast %182 : f32 to vector<2x256xf32>
    %184 = arith.mulf %183, %181 : vector<2x256xf32>
    %185 = arith.addf %177, %184 : vector<2x256xf32>
    %c0_55 = arith.constant 0 : index
    %c0_56 = arith.constant 0 : index
    %c144 = arith.constant 144 : index
    %186 = vector.load %arg5[%c0_55, %c0_56, %c144] : memref<1x2x512xf32, #tpu.memory_space<vmem>>, vector<1x2x256xf32>
    %187 = vector.shape_cast %186 : vector<1x2x256xf32> to vector<2x256xf32>
    %c17 = arith.constant 17 : index
    %188 = memref.load %arg1[%c17] : memref<25xf32, #tpu.memory_space<smem>>
    %189 = vector.broadcast %188 : f32 to vector<2x256xf32>
    %190 = arith.mulf %189, %187 : vector<2x256xf32>
    %191 = arith.addf %185, %190 : vector<2x256xf32>
    %c0_57 = arith.constant 0 : index
    %c0_58 = arith.constant 0 : index
    %c145 = arith.constant 145 : index
    %192 = vector.load %arg5[%c0_57, %c0_58, %c145] : memref<1x2x512xf32, #tpu.memory_space<vmem>>, vector<1x2x256xf32>
    %193 = vector.shape_cast %192 : vector<1x2x256xf32> to vector<2x256xf32>
    %194 = vector.broadcast %46 : vector<1x256xf32> to vector<2x256xf32>
    %195 = arith.mulf %193, %194 : vector<2x256xf32>
    %c18 = arith.constant 18 : index
    %196 = memref.load %arg1[%c18] : memref<25xf32, #tpu.memory_space<smem>>
    %197 = vector.broadcast %196 : f32 to vector<2x256xf32>
    %198 = arith.mulf %197, %195 : vector<2x256xf32>
    %199 = arith.addf %191, %198 : vector<2x256xf32>
    %c0_59 = arith.constant 0 : index
    %c0_60 = arith.constant 0 : index
    %c146 = arith.constant 146 : index
    %200 = vector.load %arg5[%c0_59, %c0_60, %c146] : memref<1x2x512xf32, #tpu.memory_space<vmem>>, vector<1x2x256xf32>
    %201 = vector.shape_cast %200 : vector<1x2x256xf32> to vector<2x256xf32>
    %202 = vector.broadcast %53 : vector<1x256xf32> to vector<2x256xf32>
    %203 = arith.mulf %201, %202 : vector<2x256xf32>
    %c19 = arith.constant 19 : index
    %204 = memref.load %arg1[%c19] : memref<25xf32, #tpu.memory_space<smem>>
    %205 = vector.broadcast %204 : f32 to vector<2x256xf32>
    %206 = arith.mulf %205, %203 : vector<2x256xf32>
    %207 = arith.addf %199, %206 : vector<2x256xf32>
    %c0_61 = arith.constant 0 : index
    %c0_62 = arith.constant 0 : index
    %c158 = arith.constant 158 : index
    %208 = vector.load %arg5[%c0_61, %c0_62, %c158] : memref<1x2x512xf32, #tpu.memory_space<vmem>>, vector<1x2x256xf32>
    %209 = vector.shape_cast %208 : vector<1x2x256xf32> to vector<2x256xf32>
    %210 = vector.broadcast %32 : vector<1x256xf32> to vector<2x256xf32>
    %211 = arith.mulf %209, %210 : vector<2x256xf32>
    %c20 = arith.constant 20 : index
    %212 = memref.load %arg1[%c20] : memref<25xf32, #tpu.memory_space<smem>>
    %213 = vector.broadcast %212 : f32 to vector<2x256xf32>
    %214 = arith.mulf %213, %211 : vector<2x256xf32>
    %215 = arith.addf %207, %214 : vector<2x256xf32>
    %c0_63 = arith.constant 0 : index
    %c0_64 = arith.constant 0 : index
    %c159 = arith.constant 159 : index
    %216 = vector.load %arg5[%c0_63, %c0_64, %c159] : memref<1x2x512xf32, #tpu.memory_space<vmem>>, vector<1x2x256xf32>
    %217 = vector.shape_cast %216 : vector<1x2x256xf32> to vector<2x256xf32>
    %218 = vector.broadcast %39 : vector<1x256xf32> to vector<2x256xf32>
    %219 = arith.mulf %217, %218 : vector<2x256xf32>
    %c21 = arith.constant 21 : index
    %220 = memref.load %arg1[%c21] : memref<25xf32, #tpu.memory_space<smem>>
    %221 = vector.broadcast %220 : f32 to vector<2x256xf32>
    %222 = arith.mulf %221, %219 : vector<2x256xf32>
    %223 = arith.addf %215, %222 : vector<2x256xf32>
    %c0_65 = arith.constant 0 : index
    %c0_66 = arith.constant 0 : index
    %c160 = arith.constant 160 : index
    %224 = vector.load %arg5[%c0_65, %c0_66, %c160] : memref<1x2x512xf32, #tpu.memory_space<vmem>>, vector<1x2x256xf32>
    %225 = vector.shape_cast %224 : vector<1x2x256xf32> to vector<2x256xf32>
    %c22 = arith.constant 22 : index
    %226 = memref.load %arg1[%c22] : memref<25xf32, #tpu.memory_space<smem>>
    %227 = vector.broadcast %226 : f32 to vector<2x256xf32>
    %228 = arith.mulf %227, %225 : vector<2x256xf32>
    %229 = arith.addf %223, %228 : vector<2x256xf32>
    %c0_67 = arith.constant 0 : index
    %c0_68 = arith.constant 0 : index
    %c161 = arith.constant 161 : index
    %230 = vector.load %arg5[%c0_67, %c0_68, %c161] : memref<1x2x512xf32, #tpu.memory_space<vmem>>, vector<1x2x256xf32>
    %231 = vector.shape_cast %230 : vector<1x2x256xf32> to vector<2x256xf32>
    %232 = vector.broadcast %46 : vector<1x256xf32> to vector<2x256xf32>
    %233 = arith.mulf %231, %232 : vector<2x256xf32>
    %c23 = arith.constant 23 : index
    %234 = memref.load %arg1[%c23] : memref<25xf32, #tpu.memory_space<smem>>
    %235 = vector.broadcast %234 : f32 to vector<2x256xf32>
    %236 = arith.mulf %235, %233 : vector<2x256xf32>
    %237 = arith.addf %229, %236 : vector<2x256xf32>
    %c0_69 = arith.constant 0 : index
    %c0_70 = arith.constant 0 : index
    %c162 = arith.constant 162 : index
    %238 = vector.load %arg5[%c0_69, %c0_70, %c162] : memref<1x2x512xf32, #tpu.memory_space<vmem>>, vector<1x2x256xf32>
    %239 = vector.shape_cast %238 : vector<1x2x256xf32> to vector<2x256xf32>
    %240 = vector.broadcast %53 : vector<1x256xf32> to vector<2x256xf32>
    %241 = arith.mulf %239, %240 : vector<2x256xf32>
    %c24 = arith.constant 24 : index
    %242 = memref.load %arg1[%c24] : memref<25xf32, #tpu.memory_space<smem>>
    %243 = vector.broadcast %242 : f32 to vector<2x256xf32>
    %244 = arith.mulf %243, %241 : vector<2x256xf32>
    %245 = arith.addf %237, %244 : vector<2x256xf32>
    %c0_71 = arith.constant 0 : index
    %c0_72 = arith.constant 0 : index
    %c0_73 = arith.constant 0 : index
    %246 = vector.load %arg4[%c0_71, %c0_72, %c0_73] : memref<2x1x256xf32, #tpu.memory_space<vmem>>, vector<2x1x256xf32>
    %247 = vector.shape_cast %246 : vector<2x1x256xf32> to vector<2x256xf32>
    %248 = vector.shape_cast %245 : vector<2x256xf32> to vector<2x1x256xf32>
    tpu.vector_store %arg4[%c0_71, %c0_72, %c0_73], %248 {strides = array<i32>} : memref<2x1x256xf32, #tpu.memory_space<vmem>>, vector<2x1x256xf32>,
    return
  }
  func.func @transform_0(%arg0: i32, %arg1: memref<25xf32, #tpu.memory_space<smem>>, %arg2: memref<1xf32, #tpu.memory_space<smem>>) -> (i32, i32, i32) {
    %c0_i32 = arith.constant 0 : i32
    %c0_i32_0 = arith.constant 0 : i32
    %c0_i32_1 = arith.constant 0 : i32
    return %arg0, %c0_i32, %c0_i32_0 : i32, i32, i32
  }
  func.func @transform_1(%arg0: i32, %arg1: memref<25xf32, #tpu.memory_space<smem>>, %arg2: memref<1xf32, #tpu.memory_space<smem>>) -> (i32, i32, i32) {
    %c0_i32 = arith.constant 0 : i32
    %c0_i32_0 = arith.constant 0 : i32
    %c0_i32_1 = arith.constant 0 : i32
    return %arg0, %c0_i32, %c0_i32_0 : i32, i32, i32
  }
}

</mosaic_0001>

<llo_original>
// kernel: tpu_custom_call.1
$region0: #{tpu_custom_call.1}
  #allocation0 [shape = 'u32[]', space=smem, size = 0x4, offset = 0x4, fixed_abs, tag = 'smem constant byte address 0x4 - core index']
  #allocation1 [shape = 'u32[144,128]{1,0:T(1,128)}', space=vmem, size = 0x12000, scoped, tag = 'internal scratch']
  #allocation2 [shape = 'f32[1,2,512]{2,1,0:T(2,128)}', space=vmem, size = 0x1000, scoped, tag = 'scratch operand']
  #allocation3 [shape = 's32[1]{0}', space=sflag, size = 0x4, scoped, tag = 'scoped memory for tpu_custom_call.1']
  #allocation4 [shape = 'u8[512]{0}', space=smem, size = 0x200, scoped, tag = 'prefetched SMEM operand 0']
  #allocation5 [shape = 'f32[1]{0:T(128)S(6)}', space=smem, size = 0x200, scoped, tag = 'prefetched SMEM operand 1']
  %s0 = inlined_call_operand.vmem [shape: f32[25], index: 0, kind: input, shape index: {}]
  %s1 = inlined_call_operand.<no memory space> [shape: f32[1], index: 1, kind: input, shape index: {}]
  %s2 = inlined_call_operand.hbm [shape: f32[2,1,256], index: 2, kind: input, shape index: {}]
  %s3 = inlined_call_operand.hbm [shape: f32[2,1,256], index: 3, kind: output, shape index: {}]
  %s4 = sld [smem:[#allocation0]]
  $region18: #{tpu_custom_call.1} parent=0
    _
  %s6 = ssub.s32 1, %s4
  %s7 = scalar_select 0, %s6, %s4
  %s8 = sshll.u32 %s0, 4
  %s9 = int_to_ptr.vmem [resolvable:$true] %s8
  %11 = dma.vmem_to_smem %s9, 16, [#allocation4], [#allocation3]
  %12 = sst [smem:[#allocation5]] %s1
  %13 = dma.done [#allocation3], 16
  %14 = sfence
  $region1: #{tpu_custom_call.1} parent=0
    #allocation6 [shape = 'u8[2048]{0}', space=vmem, size = 0x800, scoped, tag = 'input window, operand 2, single buffered']
    #allocation7 [shape = 's32[1]{0}', space=sflag, size = 0x4, scoped, tag = 'scoped memory for tpu_custom_call.1']
    #allocation8 [shape = 's32[1]{0}', space=sflag, size = 0x4, scoped, tag = 'scoped memory for tpu_custom_call.1']
    #allocation9 [shape = 'u8[2048]{0}', space=vmem, size = 0x800, scoped, tag = 'output window, operand 0, single buffered']
    %15 = vsyncpa [#allocation7], 0
    %16 = vsyncpa [#allocation8], 0
    // Predicated region
    $region2: #{tpu_custom_call.1} parent=1 // pred_check
      _
    $region3: #{tpu_custom_call.1} parent=1 // pred_check_branch
      %18 = sbr.rel (0) target = $region5
    $region4: #{tpu_custom_call.1} parent=1 // pred_region
      %s20 = ssub.s32 64, 64
      %21 = vsyncadd [#allocation7], %s20
      %s22 = sshll.u32 [#allocation6], 4
      %s23 = int_to_ptr.vmem [resolvable:$true] %s22
      %28 = dma.hbm_to_vmem [thread:$0]  %s2, 64, %s23, [#allocation7], 32, 32, 2
    $region5: #{tpu_custom_call.1} parent=1 // pred_fallthru
      _
    // Predicated region
    $region6: #{tpu_custom_call.1} parent=1 // pred_check
      _
    $region7: #{tpu_custom_call.1} parent=1 // pred_check_branch
      %30 = sbr.rel (0) target = $region9
    $region8: #{tpu_custom_call.1} parent=1 // pred_region
      %31 = dma.done [#allocation7], 64
    $region9: #{tpu_custom_call.1} parent=1 // pred_fallthru
      _
    %32 = vst [vmem:[#allocation2] sm:$0x3] 0.0
    %33 = vst [vmem:[#allocation2 + $0x6] sm:$0x3] 0.0
    %v34 = vld [vmem:[#allocation6] sm:$0x3]
    %v35 = vld [vmem:[#allocation6 + $0x2] sm:$0x3]
    %v38 = vcombine.low %v34, %v35
    %v40 = vunpack.c.l.s4 1935823168
    %v41 = vunpack.c.0.s8 %v40
    %v42 = vlaneseq
    %v43 = vshrl.u32 %v42, 7
    %v44 = vsub.s32 %v41, %v43
    %v45 = vrot.slane %v38, %v44
    %47 = vst [vmem:[#allocation2 + $0x2] sm:$0xf] %v45
    %v48 = vlaneseq
    %v49 = vand.u32 %v48, 127
    %v50 = vadd.s32 %v49, 128
    %vm51 = vcmp.lt.s32.totalorder %v49, 0
    %v52 = vsub.s32 0, %v49
    %v53 = vsel %vm51, %v52, %v49
    %v54 = vshrl.u32 %v53, 4
    %v55 = vand.u32 %v53, 15
    %v56 = vsub.s32 0, %v55
    %v57 = vsel %vm51, %v56, %v55
    %vm58 = vcmp.lt.s32.totalorder %v50, 0
    %v59 = vsub.s32 0, %v50
    %v60 = vsel %vm58, %v59, %v50
    %v61 = vshrl.u32 %v60, 4
    %v62 = vand.u32 %v60, 15
    %v63 = vsub.s32 0, %v62
    %v64 = vsel %vm58, %v63, %v62
    %vm65 = vcmp.ne.s32.totalorder %v57, 0
    %vm66 = vcmp.ne.s32.totalorder %v64, 0
    %vm67 = vcmp.lt.s32.totalorder %v57, 0
    %vm68 = vcmp.lt.s32.totalorder %v64, 0
    %vm69 = vmand %vm67, %vm65
    %vm70 = vmand %vm68, %vm66
    %v71 = vadd.s32 %v57, 16
    %v72 = vadd.s32 %v64, 16
    %v73 = vsel %vm69, %v71, %v57
    %v74 = vsel %vm70, %v72, %v64
    %vm75 = vcmp.ge.s32.totalorder %v73, 2
    %vm76 = vcmp.ge.s32.totalorder %v74, 2
    %vm77 = vcmp.lt.s32.totalorder %v73, 16
    %vm78 = vcmp.lt.s32.totalorder %v74, 16
    %vm79 = vmand %vm75, %vm77
    %vm80 = vmand %vm76, %vm78
    %v81 = vsel %vm79, 1, 0
    %v82 = vsel %vm80, 1, 0
    %v83 = vcvt.s32.f32 %v81
    %v84 = vcvt.s32.f32 %v82
    %vm85 = vcmp.ge.s32.totalorder %v73, 1
    %vm86 = vcmp.ge.s32.totalorder %v74, 1
    %vm87 = vmand %vm85, %vm77
    %vm88 = vmand %vm86, %vm78
    %v89 = vsel %vm87, 1, 0
    %v90 = vsel %vm88, 1, 0
    %v91 = vcvt.s32.f32 %v89
    %v92 = vcvt.s32.f32 %v90
    %vm93 = vcmp.ge.s32.totalorder %v73, 0
    %vm94 = vcmp.ge.s32.totalorder %v74, 0
    %vm95 = vcmp.lt.s32.totalorder %v73, 15
    %vm96 = vcmp.lt.s32.totalorder %v74, 15
    %vm97 = vmand %vm93, %vm95
    %vm98 = vmand %vm94, %vm96
    %v99 = vsel %vm97, 1, 0
    %v100 = vsel %vm98, 1, 0
    %v101 = vcvt.s32.f32 %v99
    %v102 = vcvt.s32.f32 %v100
    %vm103 = vcmp.lt.s32.totalorder %v73, 14
    %vm104 = vcmp.lt.s32.totalorder %v74, 14
    %vm105 = vmand %vm93, %vm103
    %vm106 = vmand %vm94, %vm104
    %v107 = vsel %vm105, 1, 0
    %v108 = vsel %vm106, 1, 0
    %v109 = vcvt.s32.f32 %v107
    %v110 = vcvt.s32.f32 %v108
    %s111 = sld [smem:[#allocation5]]
    %v112 = vstv %s111
    %v113 = vld [vmem:[#allocation2] sm:$0x3f]
    %v116 = vcombine.low %v83, %v84
    %v118 = vunpack.c.l.s4 1983009808
    %v119 = vunpack.c.0.s8 %v118
    %v120 = vlaneseq
    %v121 = vshrl.u32 %v120, 7
    %v122 = vsub.s32 %v119, %v121
    %v123 = vrot.slane %v116, %v122
    %124 = vrot.lane.b32.xlu0 %v123, 94
    %v125 = vpop.permute.xlu0 %124
    %v126 = vrot.slane %v125, 6
    %vm127 = vcmask 769024
    %v128 = vsel %vm127, %v126, %v125
    %v130 = vmul.f32 %v113, %v128
    %s131 = sld [smem:[#allocation4]]
    %v132 = vstv %s131
    %v133 = vmul.f32 %v132, %v130
    %v134 = vadd.f32 %v112, %v133
    %v135 = vld [vmem:[#allocation2] sm:$0x3f]
    %v138 = vcombine.low %v91, %v92
    %v140 = vunpack.c.l.s4 1983009808
    %v141 = vunpack.c.0.s8 %v140
    %v142 = vlaneseq
    %v143 = vshrl.u32 %v142, 7
    %v144 = vsub.s32 %v141, %v143
    %v145 = vrot.slane %v138, %v144
    %146 = vrot.lane.b32.xlu0 %v145, 95
    %v147 = vpop.permute.xlu0 %146
    %v148 = vrot.slane %v147, 6
    %vm149 = vcmask 777216
    %v150 = vsel %vm149, %v148, %v147
    %v152 = vmul.f32 %v135, %v150
    %s153 = sld [smem:[#allocation4 + $0x1]]
    %v154 = vstv %s153
    %v155 = vmul.f32 %v154, %v152
    %157 = vrot.lane.b32.xlu0 %v155, 127
    %v158 = vpop.permute.xlu0 %157
    %v159 = vrot.slane %v158, 2
    %vm160 = vcmask 1039360
    %v161 = vsel %vm160, %v158, %v159
    %v163 = vadd.f32 %v134, %v161
    %v164 = vld [vmem:[#allocation2] sm:$0x3f]
    %s165 = sld [smem:[#allocation4 + $0x2]]
    %v166 = vstv %s165
    %v167 = vmul.f32 %v166, %v164
    %169 = vrot.lane.b32.xlu0 %v167, 126
    %v170 = vpop.permute.xlu0 %169
    %v171 = vrot.slane %v170, 2
    %vm172 = vcmask 1031168
    %v173 = vsel %vm172, %v170, %v171
    %v175 = vadd.f32 %v163, %v173
    %v178 = vcombine.low %v101, %v102
    %v180 = vunpack.c.l.s4 1983009808
    %v181 = vunpack.c.0.s8 %v180
    %v182 = vlaneseq
    %v183 = vshrl.u32 %v182, 7
    %v184 = vsub.s32 %v181, %v183
    %v185 = vrot.slane %v178, %v184
    %186 = vrot.lane.b32.xlu0 %v185, 97
    %v187 = vpop.permute.xlu0 %186
    %v188 = vrot.slane %v187, 6
    %vm189 = vcmask 793600
    %v190 = vsel %vm189, %v188, %v187
    %v192 = vmul.f32 %v164, %v190
    %s193 = sld [smem:[#allocation4 + $0x3]]
    %v194 = vstv %s193
    %v195 = vmul.f32 %v194, %v192
    %197 = vrot.lane.b32.xlu0 %v195, 125
    %v198 = vpop.permute.xlu0 %197
    %v199 = vrot.slane %v198, 2
    %vm200 = vcmask 1022976
    %v201 = vsel %vm200, %v198, %v199
    %v203 = vadd.f32 %v175, %v201
    %v204 = vld [vmem:[#allocation2] sm:$0x3f]
    %v207 = vcombine.low %v109, %v110
    %v209 = vunpack.c.l.s4 1983009808
    %v210 = vunpack.c.0.s8 %v209
    %v211 = vlaneseq
    %v212 = vshrl.u32 %v211, 7
    %v213 = vsub.s32 %v210, %v212
    %v214 = vrot.slane %v207, %v213
    %215 = vrot.lane.b32.xlu0 %v214, 98
    %v216 = vpop.permute.xlu0 %215
    %v217 = vrot.slane %v216, 6
    %vm218 = vcmask 801792
    %v219 = vsel %vm218, %v217, %v216
    %v221 = vmul.f32 %v204, %v219
    %s222 = sld [smem:[#allocation4 + $0x4]]
    %v223 = vstv %s222
    %v224 = vmul.f32 %v223, %v221
    %226 = vrot.lane.b32.xlu0 %v224, 124
    %v227 = vpop.permute.xlu0 %226
    %v228 = vrot.slane %v227, 2
    %vm229 = vcmask 1014784
    %v230 = vsel %vm229, %v227, %v228
    %v232 = vadd.f32 %v203, %v230
    %v233 = vld [vmem:[#allocation2] sm:$0x3f]
    %234 = vrot.lane.b32.xlu0 %v123, 110
    %v235 = vpop.permute.xlu0 %234
    %v236 = vrot.slane %v235, 6
    %vm237 = vcmask 900096
    %v238 = vsel %vm237, %v236, %v235
    %v240 = vmul.f32 %v233, %v238
    %s241 = sld [smem:[#allocation4 + $0x5]]
    %v242 = vstv %s241
    %v243 = vmul.f32 %v242, %v240
    %245 = vrot.lane.b32.xlu0 %v243, 112
    %v246 = vpop.permute.xlu0 %245
    %v247 = vrot.slane %v246, 2
    %vm248 = vcmask 916480
    %v249 = vsel %vm248, %v246, %v247
    %v251 = vadd.f32 %v232, %v249
    %v252 = vld [vmem:[#allocation2] sm:$0x3f]
    %253 = vrot.lane.b32.xlu0 %v145, 111
    %v254 = vpop.permute.xlu0 %253
    %v255 = vrot.slane %v254, 6
    %vm256 = vcmask 908288
    %v257 = vsel %vm256, %v255, %v254
    %v259 = vmul.f32 %v252, %v257
    %s260 = sld [smem:[#allocation4 + $0x6]]
    %v261 = vstv %s260
    %v262 = vmul.f32 %v261, %v259
    %264 = vrot.lane.b32.xlu0 %v262, 111
    %v265 = vpop.permute.xlu0 %264
    %v266 = vrot.slane %v265, 2
    %v267 = vsel %vm256, %v265, %v266
    %v269 = vadd.f32 %v251, %v267
    %v270 = vld [vmem:[#allocation2] sm:$0x3f]
    %s271 = sld [smem:[#allocation4 + $0x7]]
    %v272 = vstv %s271
    %v273 = vmul.f32 %v272, %v270
    %275 = vrot.lane.b32.xlu0 %v273, 110
    %v276 = vpop.permute.xlu0 %275
    %v277 = vrot.slane %v276, 2
    %v278 = vsel %vm237, %v276, %v277
    %v280 = vadd.f32 %v269, %v278
    %281 = vrot.lane.b32.xlu0 %v185, 113
    %v282 = vpop.permute.xlu0 %281
    %v283 = vrot.slane %v282, 6
    %vm284 = vcmask 924672
    %v285 = vsel %vm284, %v283, %v282
    %v287 = vmul.f32 %v270, %v285
    %s288 = sld [smem:[#allocation4 + $0x8]]
    %v289 = vstv %s288
    %v290 = vmul.f32 %v289, %v287
    %292 = vrot.lane.b32.xlu0 %v290, 109
    %v293 = vpop.permute.xlu0 %292
    %v294 = vrot.slane %v293, 2
    %vm295 = vcmask 891904
    %v296 = vsel %vm295, %v293, %v294
    %v298 = vadd.f32 %v280, %v296
    %v299 = vld [vmem:[#allocation2] sm:$0x3f]
    %300 = vrot.lane.b32.xlu0 %v214, 114
    %v301 = vpop.permute.xlu0 %300
    %v302 = vrot.slane %v301, 6
    %vm303 = vcmask 932864
    %v304 = vsel %vm303, %v302, %v301
    %v306 = vmul.f32 %v299, %v304
    %s307 = sld [smem:[#allocation4 + $0x9]]
    %v308 = vstv %s307
    %v309 = vmul.f32 %v308, %v306
    %311 = vrot.lane.b32.xlu0 %v309, 108
    %v312 = vpop.permute.xlu0 %311
    %v313 = vrot.slane %v312, 2
    %vm314 = vcmask 883712
    %v315 = vsel %vm314, %v312, %v313
    %v317 = vadd.f32 %v298, %v315
    %v318 = vld [vmem:[#allocation2] sm:$0x3f]
    %319 = vrot.lane.b32.xlu0 %v123, 126
    %v320 = vpop.permute.xlu0 %319
    %v321 = vrot.slane %v320, 6
    %v322 = vsel %vm172, %v321, %v320
    %v324 = vmul.f32 %v318, %v322
    %s325 = sld [smem:[#allocation4 + $0xa]]
    %v326 = vstv %s325
    %v327 = vmul.f32 %v326, %v324
    %329 = vrot.lane.b32.xlu0 %v327, 96
    %v330 = vpop.permute.xlu0 %329
    %v331 = vrot.slane %v330, 2
    %vm332 = vcmask 785408
    %v333 = vsel %vm332, %v330, %v331
    %v335 = vadd.f32 %v317, %v333
    %v336 = vld [vmem:[#allocation2] sm:$0x3f]
    %337 = vrot.lane.b32.xlu0 %v145, 127
    %v338 = vpop.permute.xlu0 %337
    %v339 = vrot.slane %v338, 6
    %v340 = vsel %vm160, %v339, %v338
    %v342 = vmul.f32 %v336, %v340
    %s343 = sld [smem:[#allocation4 + $0xb]]
    %v344 = vstv %s343
    %v345 = vmul.f32 %v344, %v342
    %347 = vrot.lane.b32.xlu0 %v345, 95
    %v348 = vpop.permute.xlu0 %347
    %v349 = vrot.slane %v348, 2
    %v350 = vsel %vm149, %v348, %v349
    %v352 = vadd.f32 %v335, %v350
    %v353 = vld [vmem:[#allocation2 + $0x2] sm:$0xf]
    %s354 = sld [smem:[#allocation4 + $0xc]]
    %v355 = vstv %s354
    %v356 = vmul.f32 %v355, %v353
    %358 = vrot.lane.b32.xlu0 %v356, 94
    %v359 = vpop.permute.xlu0 %358
    %v360 = vrot.slane %v359, 6
    %v361 = vsel %vm127, %v360, %v359
    %v363 = vadd.f32 %v352, %v361
    %v364 = vld [vmem:[#allocation2 + $0x2] sm:$0x3f]
    %365 = vrot.lane.b32.xlu0 %v185, 1
    %v366 = vpop.permute.xlu0 %365
    %v367 = vrot.slane %v366, 6
    %vm368 = vcmask 7168
    %v369 = vsel %vm368, %v367, %v366
    %v371 = vmul.f32 %v364, %v369
    %s372 = sld [smem:[#allocation4 + $0xd]]
    %v373 = vstv %s372
    %v374 = vmul.f32 %v373, %v371
    %376 = vrot.lane.b32.xlu0 %v374, 93
    %v377 = vpop.permute.xlu0 %376
    %v378 = vrot.slane %v377, 6
    %vm379 = vcmask 760832
    %v380 = vsel %vm379, %v378, %v377
    %v382 = vadd.f32 %v363, %v380
    %v383 = vld [vmem:[#allocation2 + $0x2] sm:$0x3f]
    %384 = vrot.lane.b32.xlu0 %v214, 2
    %v385 = vpop.permute.xlu0 %384
    %v386 = vrot.slane %v385, 6
    %vm387 = vcmask 15360
    %v388 = vsel %vm387, %v386, %v385
    %v390 = vmul.f32 %v383, %v388
    %s391 = sld [smem:[#allocation4 + $0xe]]
    %v392 = vstv %s391
    %v393 = vmul.f32 %v392, %v390
    %395 = vrot.lane.b32.xlu0 %v393, 92
    %v396 = vpop.permute.xlu0 %395
    %v397 = vrot.slane %v396, 6
    %vm398 = vcmask 752640
    %v399 = vsel %vm398, %v397, %v396
    %v401 = vadd.f32 %v382, %v399
    %v402 = vld [vmem:[#allocation2 + $0x2] sm:$0x3f]
    %403 = vrot.lane.b32.xlu0 %v123, 14
    %v404 = vpop.permute.xlu0 %403
    %v405 = vrot.slane %v404, 6
    %vm406 = vcmask 113664
    %v407 = vsel %vm406, %v405, %v404
    %v409 = vmul.f32 %v402, %v407
    %s410 = sld [smem:[#allocation4 + $0xf]]
    %v411 = vstv %s410
    %v412 = vmul.f32 %v411, %v409
    %414 = vrot.lane.b32.xlu0 %v412, 80
    %v415 = vpop.permute.xlu0 %414
    %v416 = vrot.slane %v415, 6
    %vm417 = vcmask 654336
    %v418 = vsel %vm417, %v416, %v415
    %v420 = vadd.f32 %v401, %v418
    %v421 = vld [vmem:[#allocation2 + $0x2] sm:$0x3f]
    %422 = vrot.lane.b32.xlu0 %v145, 15
    %v423 = vpop.permute.xlu0 %422
    %v424 = vrot.slane %v423, 6
    %vm425 = vcmask 121856
    %v426 = vsel %vm425, %v424, %v423
    %v428 = vmul.f32 %v421, %v426
    %s429 = sld [smem:[#allocation4 + $0x10]]
    %v430 = vstv %s429
    %v431 = vmul.f32 %v430, %v428
    %433 = vrot.lane.b32.xlu0 %v431, 79
    %v434 = vpop.permute.xlu0 %433
    %v435 = vrot.slane %v434, 6
    %vm436 = vcmask 646144
    %v437 = vsel %vm436, %v435, %v434
    %v439 = vadd.f32 %v420, %v437
    %v440 = vld [vmem:[#allocation2 + $0x2] sm:$0x3f]
    %s441 = sld [smem:[#allocation4 + $0x11]]
    %v442 = vstv %s441
    %v443 = vmul.f32 %v442, %v440
    %445 = vrot.lane.b32.xlu0 %v443, 78
    %v446 = vpop.permute.xlu0 %445
    %v447 = vrot.slane %v446, 6
    %vm448 = vcmask 637952
    %v449 = vsel %vm448, %v447, %v446
    %v451 = vadd.f32 %v439, %v449
    %452 = vrot.lane.b32.xlu0 %v185, 17
    %v453 = vpop.permute.xlu0 %452
    %v454 = vrot.slane %v453, 6
    %vm455 = vcmask 138240
    %v456 = vsel %vm455, %v454, %v453
    %v458 = vmul.f32 %v440, %v456
    %s459 = sld [smem:[#allocation4 + $0x12]]
    %v460 = vstv %s459
    %v461 = vmul.f32 %v460, %v458
    %463 = vrot.lane.b32.xlu0 %v461, 77
    %v464 = vpop.permute.xlu0 %463
    %v465 = vrot.slane %v464, 6
    %vm466 = vcmask 629760
    %v467 = vsel %vm466, %v465, %v464
    %v469 = vadd.f32 %v451, %v467
    %v470 = vld [vmem:[#allocation2 + $0x2] sm:$0x3f]
    %471 = vrot.lane.b32.xlu0 %v214, 18
    %v472 = vpop.permute.xlu0 %471
    %v473 = vrot.slane %v472, 6
    %vm474 = vcmask 146432
    %v475 = vsel %vm474, %v473, %v472
    %v477 = vmul.f32 %v470, %v475
    %s478 = sld [smem:[#allocation4 + $0x13]]
    %v479 = vstv %s478
    %v480 = vmul.f32 %v479, %v477
    %482 = vrot.lane.b32.xlu0 %v480, 76
    %v483 = vpop.permute.xlu0 %482
    %v484 = vrot.slane %v483, 6
    %vm485 = vcmask 621568
    %v486 = vsel %vm485, %v484, %v483
    %v488 = vadd.f32 %v469, %v486
    %v489 = vld [vmem:[#allocation2 + $0x2] sm:$0x3f]
    %490 = vrot.lane.b32.xlu0 %v123, 30
    %v491 = vpop.permute.xlu0 %490
    %v492 = vrot.slane %v491, 6
    %vm493 = vcmask 244736
    %v494 = vsel %vm493, %v492, %v491
    %v496 = vmul.f32 %v489, %v494
    %s497 = sld [smem:[#allocation4 + $0x14]]
    %v498 = vstv %s497
    %v499 = vmul.f32 %v498, %v496
    %501 = vrot.lane.b32.xlu0 %v499, 64
    %v502 = vpop.permute.xlu0 %501
    %v503 = vrot.slane %v502, 6
    %vm504 = vcmask 523264
    %v505 = vsel %vm504, %v503, %v502
    %v507 = vadd.f32 %v488, %v505
    %v508 = vld [vmem:[#allocation2 + $0x2] sm:$0x3f]
    %509 = vrot.lane.b32.xlu0 %v145, 31
    %v510 = vpop.permute.xlu0 %509
    %v511 = vrot.slane %v510, 6
    %vm512 = vcmask 252928
    %v513 = vsel %vm512, %v511, %v510
    %v515 = vmul.f32 %v508, %v513
    %s516 = sld [smem:[#allocation4 + $0x15]]
    %v517 = vstv %s516
    %v518 = vmul.f32 %v517, %v515
    %520 = vrot.lane.b32.xlu0 %v518, 63
    %v521 = vpop.permute.xlu0 %520
    %v522 = vrot.slane %v521, 6
    %vm523 = vcmask 515072
    %v524 = vsel %vm523, %v522, %v521
    %v526 = vadd.f32 %v507, %v524
    %v527 = vld [vmem:[#allocation2 + $0x2] sm:$0x3f]
    %s528 = sld [smem:[#allocation4 + $0x16]]
    %v529 = vstv %s528
    %v530 = vmul.f32 %v529, %v527
    %532 = vrot.lane.b32.xlu0 %v530, 62
    %v533 = vpop.permute.xlu0 %532
    %v534 = vrot.slane %v533, 6
    %vm535 = vcmask 506880
    %v536 = vsel %vm535, %v534, %v533
    %v538 = vadd.f32 %v526, %v536
    %539 = vrot.lane.b32.xlu0 %v185, 33
    %v540 = vpop.permute.xlu0 %539
    %v541 = vrot.slane %v540, 6
    %vm542 = vcmask 269312
    %v543 = vsel %vm542, %v541, %v540
    %v545 = vmul.f32 %v527, %v543
    %s546 = sld [smem:[#allocation4 + $0x17]]
    %v547 = vstv %s546
    %v548 = vmul.f32 %v547, %v545
    %550 = vrot.lane.b32.xlu0 %v548, 61
    %v551 = vpop.permute.xlu0 %550
    %v552 = vrot.slane %v551, 6
    %vm553 = vcmask 498688
    %v554 = vsel %vm553, %v552, %v551
    %v556 = vadd.f32 %v538, %v554
    %v557 = vld [vmem:[#allocation2 + $0x2] sm:$0x3f]
    %558 = vrot.lane.b32.xlu0 %v214, 34
    %v559 = vpop.permute.xlu0 %558
    %v560 = vrot.slane %v559, 6
    %vm561 = vcmask 277504
    %v562 = vsel %vm561, %v560, %v559
    %v564 = vmul.f32 %v557, %v562
    %s565 = sld [smem:[#allocation4 + $0x18]]
    %v566 = vstv %s565
    %v567 = vmul.f32 %v566, %v564
    %569 = vrot.lane.b32.xlu0 %v567, 60
    %v570 = vpop.permute.xlu0 %569
    %v571 = vrot.slane %v570, 6
    %vm572 = vcmask 490496
    %v573 = vsel %vm572, %v571, %v570
    %v575 = vadd.f32 %v556, %v573
    %v578 = vunpack.c.l.s4 1966171168
    %v579 = vunpack.c.0.s8 %v578
    %v580 = vlaneseq
    %v581 = vshrl.u32 %v580, 7
    %v582 = vsub.s32 %v579, %v581
    %v583 = vrot.slane %v575, %v582
    %v584 = vcombine.high %v583, %v583
    %585 = vrot.lane.b32.xlu0 %v583, 34
    %v586 = vpop.permute.xlu0 %585
    %587 = vrot.lane.b32.xlu0 %v584, 34
    %v588 = vpop.permute.xlu0 %587
    %v589 = vrot.slane %v586, 1
    %v590 = vrot.slane %v588, 1
    %v591 = vsel %vm561, %v586, %v589
    %v592 = vsel %vm561, %v588, %v590
    %v595 = vlaneseq
    %vm596 = vcmp.ge.s32.totalorder %v595, 0
    %vm597 = vcmp.lt.s32.totalorder %v595, 256
    %vm598 = vmand %vm596, %vm597
    %599 = vst.msk [vmem:[#allocation9] sm:$0x3] %vm598, %v591
    %600 = vst.msk [vmem:[#allocation9 + $0x2] sm:$0x3] %vm598, %v592
    // Predicated region
    $region10: #{tpu_custom_call.1} parent=1 // pred_check
      _
    $region11: #{tpu_custom_call.1} parent=1 // pred_check_branch
      %602 = sbr.rel (0) target = $region13
    $region12: #{tpu_custom_call.1} parent=1 // pred_region
      %s604 = ssub.s32 64, 64
      %605 = vsyncadd [#allocation8], %s604
      %s606 = sshll.u32 [#allocation9], 4
      %s607 = int_to_ptr.vmem [resolvable:$true] %s606
      %612 = dma.vmem_to_hbm [thread:$0]  %s607, 64, %s3, [#allocation8], 32, 32, 2
    $region13: #{tpu_custom_call.1} parent=1 // pred_fallthru
      _
    // Predicated region
    $region14: #{tpu_custom_call.1} parent=1 // pred_check
      _
    $region15: #{tpu_custom_call.1} parent=1 // pred_check_branch
      %614 = sbr.rel (0) target = $region17
    $region16: #{tpu_custom_call.1} parent=1 // pred_region
      %615 = dma.done [#allocation8], 64
    $region17: #{tpu_custom_call.1} parent=1 // pred_fallthru
      _
    %616 = vsyncpa [#allocation7], 1
    %617 = vsyncpa [#allocation8], 1

</llo_original>
